<compile_context>
chip_gen: v7x
topology: tpu7x:2x2x1
jax: 0.10.0
libtpu: 0.0.40
codegen_flags: <defaults>
</compile_context>

<pallas_src>
import jax
import jax.numpy as jnp
from jax.experimental import pallas as pl
from jax.experimental.pallas import tpu as pltpu


def _leaky_relu(x, slope=0.01):
    # Exact LeakyReLU for slope in (0, 1): max(x, slope*x).
    return jnp.maximum(x, slope * x)


def mlp_kernel(x_ref,
               w1_ref, b1_ref,
               w2_ref, b2_ref,
               w3_ref, b3_ref,
               w4_ref, b4_ref,
               out_ref):
    # One (TB, 6) batch tile per grid step; all weights stay resident in VMEM.
    x = x_ref[...]

    h = jnp.dot(x, w1_ref[...], preferred_element_type=jnp.float32) + b1_ref[...]
    h = _leaky_relu(h)

    h = jnp.dot(h, w2_ref[...], preferred_element_type=jnp.float32) + b2_ref[...]
    h = _leaky_relu(h)

    h = jnp.dot(h, w3_ref[...], preferred_element_type=jnp.float32) + b3_ref[...]
    h = _leaky_relu(h)

    out = jnp.dot(h, w4_ref[...], preferred_element_type=jnp.float32) + b4_ref[...]
    out_ref[...] = out.astype(out_ref.dtype)


def _round8(n):
    return max(8, ((n + 7) // 8) * 8)


def net_forward(x, params, *, tb=1024):
    """x: (B, 6) float32. params: dict of w1..w4 (in,out) and b1..b4 (1,out)."""
    B, f_in = x.shape
    h1 = params["w1"].shape[1]
    h2 = params["w2"].shape[1]
    h3 = params["w3"].shape[1]
    n_jnts = params["w4"].shape[1]

    # --- Batch tiling: TB rows per grid step (multiple of 8 sublanes, f32). ---
    # When B > 16 aim for at least 2 grid steps so the "parallel" axis can be
    # split across v7x's two TensorCores; cap at `tb` to bound per-step VMEM.
    if B <= 16:
        TB = _round8(B)
    else:
        TB = min(int(tb), _round8((B + 1) // 2))
    n_steps = (B + TB - 1) // TB
    Bp = n_steps * TB
    xp = jnp.pad(x, ((0, Bp - B), (0, 0))) if Bp != B else x
    grid = (n_steps,)

    def const_spec(shape):
        # Full-array block, constant block index -> loaded once, kept resident.
        return pl.BlockSpec(shape, lambda i: (0,) * len(shape))

    in_specs = [
        pl.BlockSpec((TB, f_in), lambda i: (i, 0)),          # x tile
        const_spec(params["w1"].shape), const_spec(params["b1"].shape),
        const_spec(params["w2"].shape), const_spec(params["b2"].shape),
        const_spec(params["w3"].shape), const_spec(params["b3"].shape),
        const_spec(params["w4"].shape), const_spec(params["b4"].shape),
    ]
    # Lane count 6 == full last dim of the output array -> legal block shape;
    # only the useful 6 columns are ever written back to HBM.
    out_specs = pl.BlockSpec((TB, n_jnts), lambda i: (i, 0))

    flops = 2 * Bp * (f_in * h1 + h1 * h2 + h2 * h3 + h3 * n_jnts)
    bytes_accessed = 4 * (
        xp.size
        + sum(params[k].size for k in params)
        + Bp * n_jnts
    )

    out = pl.pallas_call(
        mlp_kernel,
        out_shape=jax.ShapeDtypeStruct((Bp, n_jnts), jnp.float32),
        grid=grid,
        in_specs=in_specs,
        out_specs=out_specs,
        compiler_params=pltpu.CompilerParams(
            dimension_semantics=("parallel",),
        ),
        cost_estimate=pl.CostEstimate(
            flops=flops, transcendentals=0, bytes_accessed=bytes_accessed),
    )(xp,
      params["w1"], params["b1"],
      params["w2"], params["b2"],
      params["w3"], params["b3"],
      params["w4"], params["b4"])

    return out if Bp == B else out[:B]


def init_params(key, n_hidden, n_jnts):
    """Deterministic synthetic init mirroring nn.Linear shapes.

    PyTorch stores Linear weights as (out, in); here we keep (in, out) so the
    kernel computes x @ W + b. Biases are kept 2-D (1, out) for TPU layout.
    """
    dims = [(6, n_hidden),
            (n_hidden, n_hidden // 2),
            (n_hidden // 2, 256),
            (256, n_jnts)]
    params = {}
    for i, (fan_in, fan_out) in enumerate(dims, start=1):
        key, kw, kb = jax.random.split(key, 3)
        bound = 1.0 / (fan_in ** 0.5)  # same bound as PyTorch's default init
        params[f"w{i}"] = jax.random.uniform(
            kw, (fan_in, fan_out), jnp.float32, -bound, bound)
        params[f"b{i}"] = jax.random.uniform(
            kb, (1, fan_out), jnp.float32, -bound, bound)
    return params


def reference_forward(x, params):
    h = x
    for i in range(1, 4):
        h = h @ params[f"w{i}"] + params[f"b{i}"]
        h = jnp.where(h >= 0, h, 0.01 * h)
    return h @ params["w4"] + params["b4"]


if __name__ == "__main__":
    n_hidden = 32
    n_jnts = 6      # Cobotta: 6 joints

    key = jax.random.PRNGKey(0)
    key, kx1, kx2 = jax.random.split(key, 3)
    params = init_params(key, n_hidden, n_jnts)

    # Small single-tile case.
    x_small = jax.random.normal(kx1, (8, 6), jnp.float32)
    out_small = jax.block_until_ready(net_forward(x_small, params))
    ref_small = reference_forward(x_small, params)
    assert out_small.shape == (8, n_jnts)
    assert jnp.allclose(out_small, ref_small, atol=1e-4, rtol=1e-4), \
        "mismatch vs reference (small)"

    # Multi-step grid with a ragged batch (exercises >=2 grid steps + padding).
    x_big = jax.random.normal(kx2, (272, 6), jnp.float32)
    out_big = jax.block_until_ready(net_forward(x_big, params))
    ref_big = reference_forward(x_big, params)
    assert out_big.shape == (272, n_jnts)
    assert jnp.allclose(out_big, ref_big, atol=1e-4, rtol=1e-4), \
        "mismatch vs reference (gridded)"

    print("KERNEL_OK")
</pallas_src>

<mosaic_0001>
module attributes {stable_mosaic.version = 11 : i64} {
  func.func @mlp_kernel(%arg0: i32, %arg1: memref<8x6xf32, #tpu.memory_space<vmem>>, %arg2: memref<6x32xf32, #tpu.memory_space<vmem>>, %arg3: memref<1x32xf32, #tpu.memory_space<vmem>>, %arg4: memref<32x16xf32, #tpu.memory_space<vmem>>, %arg5: memref<1x16xf32, #tpu.memory_space<vmem>>, %arg6: memref<16x256xf32, #tpu.memory_space<vmem>>, %arg7: memref<1x256xf32, #tpu.memory_space<vmem>>, %arg8: memref<256x6xf32, #tpu.memory_space<vmem>>, %arg9: memref<1x6xf32, #tpu.memory_space<vmem>>, %arg10: memref<8x6xf32, #tpu.memory_space<vmem>>) attributes {dimension_semantics = [#tpu.dimension_semantics<parallel>], iteration_bounds = array<i64: 1>, scalar_prefetch = 0 : i64, scratch_operands = 0 : i64, tpu.core_type = #tpu.core_type<tc>, window_params = [{transform_indices = @transform_0, window_bounds = array<i64: 8, 6>}, {pipeline_mode = #tpu.pipeline_mode<synchronous>, transform_indices = @transform_1, window_bounds = array<i64: 6, 32>}, {pipeline_mode = #tpu.pipeline_mode<synchronous>, transform_indices = @transform_2, window_bounds = array<i64: 1, 32>}, {pipeline_mode = #tpu.pipeline_mode<synchronous>, transform_indices = @transform_3, window_bounds = array<i64: 32, 16>}, {pipeline_mode = #tpu.pipeline_mode<synchronous>, transform_indices = @transform_4, window_bounds = array<i64: 1, 16>}, {pipeline_mode = #tpu.pipeline_mode<synchronous>, transform_indices = @transform_5, window_bounds = array<i64: 16, 256>}, {pipeline_mode = #tpu.pipeline_mode<synchronous>, transform_indices = @transform_6, window_bounds = array<i64: 1, 256>}, {pipeline_mode = #tpu.pipeline_mode<synchronous>, transform_indices = @transform_7, window_bounds = array<i64: 256, 6>}, {pipeline_mode = #tpu.pipeline_mode<synchronous>, transform_indices = @transform_8, window_bounds = array<i64: 1, 6>}, {transform_indices = @transform_9, window_bounds = array<i64: 8, 6>}]} {
    %c0 = arith.constant 0 : index
    %c0_0 = arith.constant 0 : index
    %0 = vector.load %arg1[%c0, %c0_0] : memref<8x6xf32, #tpu.memory_space<vmem>>, vector<8x6xf32>
    %c0_1 = arith.constant 0 : index
    %c0_2 = arith.constant 0 : index
    %1 = vector.load %arg2[%c0_1, %c0_2] : memref<6x32xf32, #tpu.memory_space<vmem>>, vector<6x32xf32>
    %cst = arith.constant dense<0.000000e+00> : vector<8x32xf32>
    %2 = tpu.matmul %0, %1, %cst {dimension_numbers = #tpu.dot_dimension_numbers<[1], [0], [0], [1], [0, 0, 1, 1], [], []>} : vector<8x6xf32>, vector<6x32xf32>, vector<8x32xf32> -> vector<8x32xf32>
    %c0_3 = arith.constant 0 : index
    %c0_4 = arith.constant 0 : index
    %3 = vector.load %arg3[%c0_3, %c0_4] : memref<1x32xf32, #tpu.memory_space<vmem>>, vector<1x32xf32>
    %4 = vector.broadcast %3 : vector<1x32xf32> to vector<8x32xf32>
    %5 = arith.addf %2, %4 : vector<8x32xf32>
    %cst_5 = arith.constant 0.00999999977 : f32
    %6 = vector.broadcast %cst_5 : f32 to vector<8x32xf32>
    %7 = arith.mulf %6, %5 : vector<8x32xf32>
    %8 = arith.maximumf %5, %7 : vector<8x32xf32>
    %c0_6 = arith.constant 0 : index
    %c0_7 = arith.constant 0 : index
    %9 = vector.load %arg4[%c0_6, %c0_7] : memref<32x16xf32, #tpu.memory_space<vmem>>, vector<32x16xf32>
    %cst_8 = arith.constant dense<0.000000e+00> : vector<8x16xf32>
    %10 = tpu.matmul %8, %9, %cst_8 {dimension_numbers = #tpu.dot_dimension_numbers<[1], [0], [0], [1], [0, 0, 1, 1], [], []>} : vector<8x32xf32>, vector<32x16xf32>, vector<8x16xf32> -> vector<8x16xf32>
    %c0_9 = arith.constant 0 : index
    %c0_10 = arith.constant 0 : index
    %11 = vector.load %arg5[%c0_9, %c0_10] : memref<1x16xf32, #tpu.memory_space<vmem>>, vector<1x16xf32>
    %12 = vector.broadcast %11 : vector<1x16xf32> to vector<8x16xf32>
    %13 = arith.addf %10, %12 : vector<8x16xf32>
    %cst_11 = arith.constant 0.00999999977 : f32
    %14 = vector.broadcast %cst_11 : f32 to vector<8x16xf32>
    %15 = arith.mulf %14, %13 : vector<8x16xf32>
    %16 = arith.maximumf %13, %15 : vector<8x16xf32>
    %c0_12 = arith.constant 0 : index
    %c0_13 = arith.constant 0 : index
    %17 = vector.load %arg6[%c0_12, %c0_13] : memref<16x256xf32, #tpu.memory_space<vmem>>, vector<16x256xf32>
    %cst_14 = arith.constant dense<0.000000e+00> : vector<8x256xf32>
    %18 = tpu.matmul %16, %17, %cst_14 {dimension_numbers = #tpu.dot_dimension_numbers<[1], [0], [0], [1], [0, 0, 1, 1], [], []>} : vector<8x16xf32>, vector<16x256xf32>, vector<8x256xf32> -> vector<8x256xf32>
    %c0_15 = arith.constant 0 : index
    %c0_16 = arith.constant 0 : index
    %19 = vector.load %arg7[%c0_15, %c0_16] : memref<1x256xf32, #tpu.memory_space<vmem>>, vector<1x256xf32>
    %20 = vector.broadcast %19 : vector<1x256xf32> to vector<8x256xf32>
    %21 = arith.addf %18, %20 : vector<8x256xf32>
    %cst_17 = arith.constant 0.00999999977 : f32
    %22 = vector.broadcast %cst_17 : f32 to vector<8x256xf32>
    %23 = arith.mulf %22, %21 : vector<8x256xf32>
    %24 = arith.maximumf %21, %23 : vector<8x256xf32>
    %c0_18 = arith.constant 0 : index
    %c0_19 = arith.constant 0 : index
    %25 = vector.load %arg8[%c0_18, %c0_19] : memref<256x6xf32, #tpu.memory_space<vmem>>, vector<256x6xf32>
    %cst_20 = arith.constant dense<0.000000e+00> : vector<8x6xf32>
    %26 = tpu.matmul %24, %25, %cst_20 {dimension_numbers = #tpu.dot_dimension_numbers<[1], [0], [0], [1], [0, 0, 1, 1], [], []>} : vector<8x256xf32>, vector<256x6xf32>, vector<8x6xf32> -> vector<8x6xf32>
    %c0_21 = arith.constant 0 : index
    %c0_22 = arith.constant 0 : index
    %27 = vector.load %arg9[%c0_21, %c0_22] : memref<1x6xf32, #tpu.memory_space<vmem>>, vector<1x6xf32>
    %28 = vector.broadcast %27 : vector<1x6xf32> to vector<8x6xf32>
    %29 = arith.addf %26, %28 : vector<8x6xf32>
    %c0_23 = arith.constant 0 : index
    %c0_24 = arith.constant 0 : index
    %30 = vector.load %arg10[%c0_23, %c0_24] : memref<8x6xf32, #tpu.memory_space<vmem>>, vector<8x6xf32>
    tpu.vector_store %arg10[%c0_23, %c0_24], %29 {strides = array<i32>} : memref<8x6xf32, #tpu.memory_space<vmem>>, vector<8x6xf32>,
    return
  }
  func.func @transform_0(%arg0: i32) -> (i32, i32) {
    %c0_i32 = arith.constant 0 : i32
    %c0_i32_0 = arith.constant 0 : i32
    return %arg0, %c0_i32 : i32, i32
  }
  func.func @transform_1(%arg0: i32) -> (i32, i32) {
    %c0_i32 = arith.constant 0 : i32
    %c0_i32_0 = arith.constant 0 : i32
    %c0_i32_1 = arith.constant 0 : i32
    return %c0_i32, %c0_i32_0 : i32, i32
  }
  func.func @transform_2(%arg0: i32) -> (i32, i32) {
    %c0_i32 = arith.constant 0 : i32
    %c0_i32_0 = arith.constant 0 : i32
    %c0_i32_1 = arith.constant 0 : i32
    return %c0_i32, %c0_i32_0 : i32, i32
  }
  func.func @transform_3(%arg0: i32) -> (i32, i32) {
    %c0_i32 = arith.constant 0 : i32
    %c0_i32_0 = arith.constant 0 : i32
    %c0_i32_1 = arith.constant 0 : i32
    return %c0_i32, %c0_i32_0 : i32, i32
  }
  func.func @transform_4(%arg0: i32) -> (i32, i32) {
    %c0_i32 = arith.constant 0 : i32
    %c0_i32_0 = arith.constant 0 : i32
    %c0_i32_1 = arith.constant 0 : i32
    return %c0_i32, %c0_i32_0 : i32, i32
  }
  func.func @transform_5(%arg0: i32) -> (i32, i32) {
    %c0_i32 = arith.constant 0 : i32
    %c0_i32_0 = arith.constant 0 : i32
    %c0_i32_1 = arith.constant 0 : i32
    return %c0_i32, %c0_i32_0 : i32, i32
  }
  func.func @transform_6(%arg0: i32) -> (i32, i32) {
    %c0_i32 = arith.constant 0 : i32
    %c0_i32_0 = arith.constant 0 : i32
    %c0_i32_1 = arith.constant 0 : i32
    return %c0_i32, %c0_i32_0 : i32, i32
  }
  func.func @transform_7(%arg0: i32) -> (i32, i32) {
    %c0_i32 = arith.constant 0 : i32
    %c0_i32_0 = arith.constant 0 : i32
    %c0_i32_1 = arith.constant 0 : i32
    return %c0_i32, %c0_i32_0 : i32, i32
  }
  func.func @transform_8(%arg0: i32) -> (i32, i32) {
    %c0_i32 = arith.constant 0 : i32
    %c0_i32_0 = arith.constant 0 : i32
    %c0_i32_1 = arith.constant 0 : i32
    return %c0_i32, %c0_i32_0 : i32, i32
  }
  func.func @transform_9(%arg0: i32) -> (i32, i32) {
    %c0_i32 = arith.constant 0 : i32
    %c0_i32_0 = arith.constant 0 : i32
    return %arg0, %c0_i32 : i32, i32
  }
}

</mosaic_0001>

<llo_original>
// kernel: tpu_custom_call.1
$region0: #{tpu_custom_call.1}
  #allocation0 [shape = 'u32[]', space=smem, size = 0x4, offset = 0x4, fixed_abs, tag = 'smem constant byte address 0x4 - core index']
  #allocation1 [shape = 'u32[144,128]{1,0:T(1,128)}', space=vmem, size = 0x12000, scoped, tag = 'internal scratch']
  %s0 = inlined_call_operand.vmem [shape: f32[8,6], index: 0, kind: input, shape index: {}]
  %s1 = inlined_call_operand.vmem [shape: f32[6,32], index: 1, kind: input, shape index: {}]
  %s2 = inlined_call_operand.vmem [shape: f32[1,32], index: 2, kind: input, shape index: {}]
  %s3 = inlined_call_operand.vmem [shape: f32[32,16], index: 3, kind: input, shape index: {}]
  %s4 = inlined_call_operand.vmem [shape: f32[1,16], index: 4, kind: input, shape index: {}]
  %s5 = inlined_call_operand.vmem [shape: f32[16,256], index: 5, kind: input, shape index: {}]
  %s6 = inlined_call_operand.vmem [shape: f32[1,256], index: 6, kind: input, shape index: {}]
  %s7 = inlined_call_operand.vmem [shape: f32[256,6], index: 7, kind: input, shape index: {}]
  %s8 = inlined_call_operand.vmem [shape: f32[1,6], index: 8, kind: input, shape index: {}]
  %s9 = inlined_call_operand.hbm [shape: f32[8,6], index: 9, kind: output, shape index: {}]
  %s10 = sld [smem:[#allocation0]]
  $region46: #{tpu_custom_call.1} parent=0
    _
  %s12 = ssub.s32 1, %s10
  %s13 = scalar_select 0, %s12, %s10
  $region1: #{tpu_custom_call.1} parent=0
    #allocation2 [shape = 'u8[4096]{0}', space=vmem, size = 0x1000, scoped, tag = 'output window, operand 0, single buffered']
    #allocation3 [shape = 's32[1]{0}', space=sflag, size = 0x4, scoped, tag = 'scoped memory for tpu_custom_call.1']
    %14 = vsyncpa [#allocation3], 0
    // Predicated region
    $region2: #{tpu_custom_call.1} parent=1 // pred_check
      _
    $region3: #{tpu_custom_call.1} parent=1 // pred_check_branch
      %16 = sbr.rel (0) target = $region5
    $region4: #{tpu_custom_call.1} parent=1 // pred_region
      _
    $region5: #{tpu_custom_call.1} parent=1 // pred_fallthru
      _
    // Predicated region
    $region6: #{tpu_custom_call.1} parent=1 // pred_check
      _
    $region7: #{tpu_custom_call.1} parent=1 // pred_check_branch
      %18 = sbr.rel (0) target = $region9
    $region8: #{tpu_custom_call.1} parent=1 // pred_region
      _
    $region9: #{tpu_custom_call.1} parent=1 // pred_fallthru
      _
    // Predicated region
    $region10: #{tpu_custom_call.1} parent=1 // pred_check
      _
    $region11: #{tpu_custom_call.1} parent=1 // pred_check_branch
      %20 = sbr.rel (0) target = $region13
    $region12: #{tpu_custom_call.1} parent=1 // pred_region
      _
    $region13: #{tpu_custom_call.1} parent=1 // pred_fallthru
      _
    // Predicated region
    $region14: #{tpu_custom_call.1} parent=1 // pred_check
      _
    $region15: #{tpu_custom_call.1} parent=1 // pred_check_branch
      %22 = sbr.rel (0) target = $region17
    $region16: #{tpu_custom_call.1} parent=1 // pred_region
      _
    $region17: #{tpu_custom_call.1} parent=1 // pred_fallthru
      _
    // Predicated region
    $region18: #{tpu_custom_call.1} parent=1 // pred_check
      _
    $region19: #{tpu_custom_call.1} parent=1 // pred_check_branch
      %24 = sbr.rel (0) target = $region21
    $region20: #{tpu_custom_call.1} parent=1 // pred_region
      _
    $region21: #{tpu_custom_call.1} parent=1 // pred_fallthru
      _
    // Predicated region
    $region22: #{tpu_custom_call.1} parent=1 // pred_check
      _
    $region23: #{tpu_custom_call.1} parent=1 // pred_check_branch
      %26 = sbr.rel (0) target = $region25
    $region24: #{tpu_custom_call.1} parent=1 // pred_region
      _
    $region25: #{tpu_custom_call.1} parent=1 // pred_fallthru
      _
    // Predicated region
    $region26: #{tpu_custom_call.1} parent=1 // pred_check
      _
    $region27: #{tpu_custom_call.1} parent=1 // pred_check_branch
      %28 = sbr.rel (0) target = $region29
    $region28: #{tpu_custom_call.1} parent=1 // pred_region
      _
    $region29: #{tpu_custom_call.1} parent=1 // pred_fallthru
      _
    // Predicated region
    $region30: #{tpu_custom_call.1} parent=1 // pred_check
      _
    $region31: #{tpu_custom_call.1} parent=1 // pred_check_branch
      %30 = sbr.rel (0) target = $region33
    $region32: #{tpu_custom_call.1} parent=1 // pred_region
      _
    $region33: #{tpu_custom_call.1} parent=1 // pred_fallthru
      _
    // Predicated region
    $region34: #{tpu_custom_call.1} parent=1 // pred_check
      _
    $region35: #{tpu_custom_call.1} parent=1 // pred_check_branch
      %32 = sbr.rel (0) target = $region37
    $region36: #{tpu_custom_call.1} parent=1 // pred_region
      _
    $region37: #{tpu_custom_call.1} parent=1 // pred_fallthru
      _
    %v33 = vld [vmem:[%s0] sm:$0xff]
    %v34 = vld [vmem:[%s1] sm:$0x3f]
    %v35 = vld [vmem:[%s2] sm:$0x1]
    %v37 = vlaneseq
    %v38 = vshrl.u32 %v37, 7
    %v39 = vsub.s32 0, %v38
    %v40 = vrot.slane %v35, %v39
    %vm42 = vcmask 48128
    %v44 = vsel %vm42, %v33, 0
    %vm46 = vcmask 1045504
    %v48 = vsel %vm46, %v34, 0
    %50 = vmatprep.subr.mxu0 0.0
    %51 = vmatpush1.msra.mxu0 %v48
    %52 = vmatprep.subr.mxu0 0.0
    %53 = vmatpush1.msra.mxu0 0.0
    %54 = vmatprep.subr.mxu0 0.0
    %55 = vmatpush1.msra.mxu0 0.0
    %56 = vmatprep.subr.mxu0 0.0
    %57 = vmatpush1.msra.mxu0 0.0
    %58 = vmatprep.subr.mxu0 0.0
    %59 = vmatpush1.msra.mxu0 0.0
    %60 = vmatprep.subr.mxu0 0.0
    %61 = vmatpush1.msra.mxu0 0.0
    %62 = vmatprep.subr.mxu0 0.0
    %63 = vmatpush1.msra.mxu0 0.0
    %64 = vmatprep.subr.mxu0 0.0
    %65 = vmatpush1.msra.mxu0 0.0
    %66 = vmatprep.subr.mxu0 0.0
    %67 = vmatpush1.msra.mxu0 0.0
    %68 = vmatprep.subr.mxu0 0.0
    %69 = vmatpush1.msra.mxu0 0.0
    %70 = vmatprep.subr.mxu0 0.0
    %71 = vmatpush1.msra.mxu0 0.0
    %72 = vmatprep.subr.mxu0 0.0
    %73 = vmatpush1.msra.mxu0 0.0
    %74 = vmatprep.subr.mxu0 0.0
    %75 = vmatpush1.msra.mxu0 0.0
    %76 = vmatprep.subr.mxu0 0.0
    %77 = vmatpush1.msra.mxu0 0.0
    %78 = vmatprep.subr.mxu0 0.0
    %79 = vmatpush1.msra.mxu0 0.0
    %80 = vmatprep.subr.mxu0 0.0
    %81 = vmatpush1.msra.mxu0 0.0
    %82 = vmatprep.subr.mxu0 0.0
    %83 = vmatpush1.msra.mxu0 0.0
    %84 = vmatprep.subr.mxu0 0.0
    %85 = vmatpush1.msra.mxu0 0.0
    %86 = vmatprep.subr.mxu0 0.0
    %87 = vmatpush1.msra.mxu0 0.0
    %88 = vmatprep.subr.mxu0 0.0
    %89 = vmatpush1.msra.mxu0 0.0
    %90 = vmatprep.subr.mxu0 0.0
    %91 = vmatpush1.msra.mxu0 0.0
    %92 = vmatprep.subr.mxu0 0.0
    %93 = vmatpush1.msra.mxu0 0.0
    %94 = vmatprep.subr.mxu0 0.0
    %95 = vmatpush1.msra.mxu0 0.0
    %96 = vmatprep.subr.mxu0 0.0
    %97 = vmatpush1.msra.mxu0 0.0
    %98 = vmatprep.subr.mxu0 0.0
    %99 = vmatpush1.msra.mxu0 0.0
    %100 = vmatprep.subr.mxu0 0.0
    %101 = vmatpush1.msra.mxu0 0.0
    %102 = vmatprep.subr.mxu0 0.0
    %103 = vmatpush1.msra.mxu0 0.0
    %104 = vmatprep.subr.mxu0 0.0
    %105 = vmatpush1.msra.mxu0 0.0
    %106 = vmatprep.subr.mxu0 0.0
    %107 = vmatpush1.msra.mxu0 0.0
    %108 = vmatprep.subr.mxu0 0.0
    %109 = vmatpush1.msra.mxu0 0.0
    %110 = vmatprep.subr.mxu0 0.0
    %111 = vmatpush1.msra.mxu0 0.0
    %112 = vmatprep.subr.mxu0 0.0
    %113 = vmatpush1.msra.mxu0 0.0
    %114 = vmatprep.mubr.f32.mxu0 0.0
    %115 = vmatmul.mubr.f32.gmra.mrb[0].mxu0 %v44
    %v116 = vpop.f32.mrb[0].mxu0
    %v117 = vadd.f32 %v40, %v116
    %v118 = vpop.f32.mrb[0].mxu0
    %119 = vdwg.mxu0
    %v120 = vmul.f32 %v117, 0.01
    %v121 = vmax.f32 %v117, %v120
    %v122 = vld [vmem:[%s3] sm:$0xff]
    %v123 = vld [vmem:[%s3 + $0x8] sm:$0xff]
    %v124 = vld [vmem:[%s3 + $0x10] sm:$0xff]
    %v125 = vld [vmem:[%s3 + $0x18] sm:$0xff]
    %v126 = vld [vmem:[%s4] sm:$0x1]
    %v128 = vlaneseq
    %v129 = vshrl.u32 %v128, 7
    %v130 = vsub.s32 0, %v129
    %v131 = vrot.slane %v126, %v130
    %vm133 = vcmask 261120
    %v135 = vsel %vm133, %v121, 0
    %137 = vmatprep.subr.mxu0 0.0
    %138 = vmatpush1.msra.mxu0 %v122
    %139 = vmatprep.subr.mxu0 0.0
    %140 = vmatpush1.msra.mxu0 %v123
    %141 = vmatprep.subr.mxu0 0.0
    %142 = vmatpush1.msra.mxu0 %v124
    %143 = vmatprep.subr.mxu0 0.0
    %144 = vmatpush1.msra.mxu0 %v125
    %145 = vmatprep.subr.mxu0 0.0
    %146 = vmatpush1.msra.mxu0 0.0
    %147 = vmatprep.subr.mxu0 0.0
    %148 = vmatpush1.msra.mxu0 0.0
    %149 = vmatprep.subr.mxu0 0.0
    %150 = vmatpush1.msra.mxu0 0.0
    %151 = vmatprep.subr.mxu0 0.0
    %152 = vmatpush1.msra.mxu0 0.0
    %153 = vmatprep.subr.mxu0 0.0
    %154 = vmatpush1.msra.mxu0 0.0
    %155 = vmatprep.subr.mxu0 0.0
    %156 = vmatpush1.msra.mxu0 0.0
    %157 = vmatprep.subr.mxu0 0.0
    %158 = vmatpush1.msra.mxu0 0.0
    %159 = vmatprep.subr.mxu0 0.0
    %160 = vmatpush1.msra.mxu0 0.0
    %161 = vmatprep.subr.mxu0 0.0
    %162 = vmatpush1.msra.mxu0 0.0
    %163 = vmatprep.subr.mxu0 0.0
    %164 = vmatpush1.msra.mxu0 0.0
    %165 = vmatprep.subr.mxu0 0.0
    %166 = vmatpush1.msra.mxu0 0.0
    %167 = vmatprep.subr.mxu0 0.0
    %168 = vmatpush1.msra.mxu0 0.0
    %169 = vmatprep.subr.mxu0 0.0
    %170 = vmatpush1.msra.mxu0 0.0
    %171 = vmatprep.subr.mxu0 0.0
    %172 = vmatpush1.msra.mxu0 0.0
    %173 = vmatprep.subr.mxu0 0.0
    %174 = vmatpush1.msra.mxu0 0.0
    %175 = vmatprep.subr.mxu0 0.0
    %176 = vmatpush1.msra.mxu0 0.0
    %177 = vmatprep.subr.mxu0 0.0
    %178 = vmatpush1.msra.mxu0 0.0
    %179 = vmatprep.subr.mxu0 0.0
    %180 = vmatpush1.msra.mxu0 0.0
    %181 = vmatprep.subr.mxu0 0.0
    %182 = vmatpush1.msra.mxu0 0.0
    %183 = vmatprep.subr.mxu0 0.0
    %184 = vmatpush1.msra.mxu0 0.0
    %185 = vmatprep.subr.mxu0 0.0
    %186 = vmatpush1.msra.mxu0 0.0
    %187 = vmatprep.subr.mxu0 0.0
    %188 = vmatpush1.msra.mxu0 0.0
    %189 = vmatprep.subr.mxu0 0.0
    %190 = vmatpush1.msra.mxu0 0.0
    %191 = vmatprep.subr.mxu0 0.0
    %192 = vmatpush1.msra.mxu0 0.0
    %193 = vmatprep.subr.mxu0 0.0
    %194 = vmatpush1.msra.mxu0 0.0
    %195 = vmatprep.subr.mxu0 0.0
    %196 = vmatpush1.msra.mxu0 0.0
    %197 = vmatprep.subr.mxu0 0.0
    %198 = vmatpush1.msra.mxu0 0.0
    %199 = vmatprep.subr.mxu0 0.0
    %200 = vmatpush1.msra.mxu0 0.0
    %201 = vmatprep.mubr.f32.mxu0 0.0
    %202 = vmatmul.mubr.f32.gmra.mrb[0].mxu0 %v135
    %v203 = vpop.f32.mrb[0].mxu0
    %v204 = vadd.f32 %v131, %v203
    %v205 = vpop.f32.mrb[0].mxu0
    %206 = vdwg.mxu0
    %v207 = vmul.f32 %v204, 0.01
    %v208 = vmax.f32 %v204, %v207
    %v209 = vld [vmem:[%s5] sm:$0xff]
    %v210 = vld [vmem:[%s5 + $0x8] sm:$0xff]
    %v211 = vld [vmem:[%s5 + $0x10] sm:$0xff]
    %v212 = vld [vmem:[%s5 + $0x18] sm:$0xff]
    %v213 = vld [vmem:[%s6] sm:$0x3]
    %v215 = vlaneseq
    %v216 = vshrl.u32 %v215, 7
    %v217 = vsub.s32 0, %v216
    %v218 = vrot.slane %v213, %v217
    %v219 = vlaneseq
    %v220 = vshrl.u32 %v219, 7
    %v221 = vsub.s32 1, %v220
    %v222 = vrot.slane %v213, %v221
    %vm225 = vcmask 130048
    %v227 = vsel %vm225, %v208, 0
    %229 = vmatprep.subr.mxu0 %v210
    %230 = vmatpush1.msra.mxu0 %v209
    %231 = vmatprep.subr.mxu0 %v212
    %232 = vmatpush1.msra.mxu0 %v211
    %233 = vmatprep.subr.mxu0 0.0
    %234 = vmatpush1.msra.mxu0 0.0
    %235 = vmatprep.subr.mxu0 0.0
    %236 = vmatpush1.msra.mxu0 0.0
    %237 = vmatprep.subr.mxu0 0.0
    %238 = vmatpush1.msra.mxu0 0.0
    %239 = vmatprep.subr.mxu0 0.0
    %240 = vmatpush1.msra.mxu0 0.0
    %241 = vmatprep.subr.mxu0 0.0
    %242 = vmatpush1.msra.mxu0 0.0
    %243 = vmatprep.subr.mxu0 0.0
    %244 = vmatpush1.msra.mxu0 0.0
    %245 = vmatprep.subr.mxu0 0.0
    %246 = vmatpush1.msra.mxu0 0.0
    %247 = vmatprep.subr.mxu0 0.0
    %248 = vmatpush1.msra.mxu0 0.0
    %249 = vmatprep.subr.mxu0 0.0
    %250 = vmatpush1.msra.mxu0 0.0
    %251 = vmatprep.subr.mxu0 0.0
    %252 = vmatpush1.msra.mxu0 0.0
    %253 = vmatprep.subr.mxu0 0.0
    %254 = vmatpush1.msra.mxu0 0.0
    %255 = vmatprep.subr.mxu0 0.0
    %256 = vmatpush1.msra.mxu0 0.0
    %257 = vmatprep.subr.mxu0 0.0
    %258 = vmatpush1.msra.mxu0 0.0
    %259 = vmatprep.subr.mxu0 0.0
    %260 = vmatpush1.msra.mxu0 0.0
    %261 = vmatprep.subr.mxu0 0.0
    %262 = vmatpush1.msra.mxu0 0.0
    %263 = vmatprep.subr.mxu0 0.0
    %264 = vmatpush1.msra.mxu0 0.0
    %265 = vmatprep.subr.mxu0 0.0
    %266 = vmatpush1.msra.mxu0 0.0
    %267 = vmatprep.subr.mxu0 0.0
    %268 = vmatpush1.msra.mxu0 0.0
    %269 = vmatprep.subr.mxu0 0.0
    %270 = vmatpush1.msra.mxu0 0.0
    %271 = vmatprep.subr.mxu0 0.0
    %272 = vmatpush1.msra.mxu0 0.0
    %273 = vmatprep.subr.mxu0 0.0
    %274 = vmatpush1.msra.mxu0 0.0
    %275 = vmatprep.subr.mxu0 0.0
    %276 = vmatpush1.msra.mxu0 0.0
    %277 = vmatprep.subr.mxu0 0.0
    %278 = vmatpush1.msra.mxu0 0.0
    %279 = vmatprep.subr.mxu0 0.0
    %280 = vmatpush1.msra.mxu0 0.0
    %281 = vmatprep.subr.mxu0 0.0
    %282 = vmatpush1.msra.mxu0 0.0
    %283 = vmatprep.subr.mxu0 0.0
    %284 = vmatpush1.msra.mxu0 0.0
    %285 = vmatprep.subr.mxu0 0.0
    %286 = vmatpush1.msra.mxu0 0.0
    %287 = vmatprep.subr.mxu0 0.0
    %288 = vmatpush1.msra.mxu0 0.0
    %289 = vmatprep.subr.mxu0 0.0
    %290 = vmatpush1.msra.mxu0 0.0
    %291 = vmatprep.subr.mxu0 0.0
    %292 = vmatpush1.msra.mxu0 0.0
    %293 = vmatprep.mubr.f32.mxu0 0.0
    %294 = vmatmul.mubr.f32.gmra.mrb[0].mxu0 %v227
    %v295 = vpop.f32.mrb[0].mxu0
    %v296 = vadd.f32 %v218, %v295
    %v297 = vpop.f32.mrb[0].mxu0
    %v298 = vadd.f32 %v222, %v297
    %299 = vdwg.mxu0
    %v300 = vmul.f32 %v296, 0.01
    %v301 = vmul.f32 %v298, 0.01
    %v302 = vmax.f32 %v296, %v300
    %v303 = vmax.f32 %v298, %v301
    %v304 = vld [vmem:[%s7] sm:$0xff]
    %v305 = vld [vmem:[%s7 + $0x8] sm:$0xff]
    %v306 = vld [vmem:[%s7 + $0x10] sm:$0xff]
    %v307 = vld [vmem:[%s7 + $0x18] sm:$0xff]
    %v308 = vld [vmem:[%s7 + $0x20] sm:$0xff]
    %v309 = vld [vmem:[%s7 + $0x28] sm:$0xff]
    %v310 = vld [vmem:[%s7 + $0x30] sm:$0xff]
    %v311 = vld [vmem:[%s7 + $0x38] sm:$0xff]
    %v312 = vld [vmem:[%s7 + $0x40] sm:$0xff]
    %v313 = vld [vmem:[%s7 + $0x48] sm:$0xff]
    %v314 = vld [vmem:[%s7 + $0x50] sm:$0xff]
    %v315 = vld [vmem:[%s7 + $0x58] sm:$0xff]
    %v316 = vld [vmem:[%s7 + $0x60] sm:$0xff]
    %v317 = vld [vmem:[%s7 + $0x68] sm:$0xff]
    %v318 = vld [vmem:[%s7 + $0x70] sm:$0xff]
    %v319 = vld [vmem:[%s7 + $0x78] sm:$0xff]
    %v320 = vld [vmem:[%s7 + $0x80] sm:$0xff]
    %v321 = vld [vmem:[%s7 + $0x88] sm:$0xff]
    %v322 = vld [vmem:[%s7 + $0x90] sm:$0xff]
    %v323 = vld [vmem:[%s7 + $0x98] sm:$0xff]
    %v324 = vld [vmem:[%s7 + $0xa0] sm:$0xff]
    %v325 = vld [vmem:[%s7 + $0xa8] sm:$0xff]
    %v326 = vld [vmem:[%s7 + $0xb0] sm:$0xff]
    %v327 = vld [vmem:[%s7 + $0xb8] sm:$0xff]
    %v328 = vld [vmem:[%s7 + $0xc0] sm:$0xff]
    %v329 = vld [vmem:[%s7 + $0xc8] sm:$0xff]
    %v330 = vld [vmem:[%s7 + $0xd0] sm:$0xff]
    %v331 = vld [vmem:[%s7 + $0xd8] sm:$0xff]
    %v332 = vld [vmem:[%s7 + $0xe0] sm:$0xff]
    %v333 = vld [vmem:[%s7 + $0xe8] sm:$0xff]
    %v334 = vld [vmem:[%s7 + $0xf0] sm:$0xff]
    %v335 = vld [vmem:[%s7 + $0xf8] sm:$0xff]
    %v336 = vld [vmem:[%s8] sm:$0x1]
    %v338 = vlaneseq
    %v339 = vshrl.u32 %v338, 7
    %v340 = vsub.s32 0, %v339
    %v341 = vrot.slane %v336, %v340
    %343 = vmatprep.subr.mxu0 0.0
    %344 = vmatpush1.msra.mxu0 %v304
    %345 = vmatprep.subr.mxu0 0.0
    %346 = vmatpush1.msra.mxu0 %v305
    %347 = vmatprep.subr.mxu0 0.0
    %348 = vmatpush1.msra.mxu0 %v306
    %349 = vmatprep.subr.mxu0 0.0
    %350 = vmatpush1.msra.mxu0 %v307
    %351 = vmatprep.subr.mxu0 0.0
    %352 = vmatpush1.msra.mxu0 %v308
    %353 = vmatprep.subr.mxu0 0.0
    %354 = vmatpush1.msra.mxu0 %v309
    %355 = vmatprep.subr.mxu0 0.0
    %356 = vmatpush1.msra.mxu0 %v310
    %357 = vmatprep.subr.mxu0 0.0
    %358 = vmatpush1.msra.mxu0 %v311
    %359 = vmatprep.subr.mxu0 0.0
    %360 = vmatpush1.msra.mxu0 %v312
    %361 = vmatprep.subr.mxu0 0.0
    %362 = vmatpush1.msra.mxu0 %v313
    %363 = vmatprep.subr.mxu0 0.0
    %364 = vmatpush1.msra.mxu0 %v314
    %365 = vmatprep.subr.mxu0 0.0
    %366 = vmatpush1.msra.mxu0 %v315
    %367 = vmatprep.subr.mxu0 0.0
    %368 = vmatpush1.msra.mxu0 %v316
    %369 = vmatprep.subr.mxu0 0.0
    %370 = vmatpush1.msra.mxu0 %v317
    %371 = vmatprep.subr.mxu0 0.0
    %372 = vmatpush1.msra.mxu0 %v318
    %373 = vmatprep.subr.mxu0 0.0
    %374 = vmatpush1.msra.mxu0 %v319
    %375 = vmatprep.subr.mxu0 0.0
    %376 = vmatpush1.msra.mxu0 %v320
    %377 = vmatprep.subr.mxu0 0.0
    %378 = vmatpush1.msra.mxu0 %v321
    %379 = vmatprep.subr.mxu0 0.0
    %380 = vmatpush1.msra.mxu0 %v322
    %381 = vmatprep.subr.mxu0 0.0
    %382 = vmatpush1.msra.mxu0 %v323
    %383 = vmatprep.subr.mxu0 0.0
    %384 = vmatpush1.msra.mxu0 %v324
    %385 = vmatprep.subr.mxu0 0.0
    %386 = vmatpush1.msra.mxu0 %v325
    %387 = vmatprep.subr.mxu0 0.0
    %388 = vmatpush1.msra.mxu0 %v326
    %389 = vmatprep.subr.mxu0 0.0
    %390 = vmatpush1.msra.mxu0 %v327
    %391 = vmatprep.subr.mxu0 0.0
    %392 = vmatpush1.msra.mxu0 %v328
    %393 = vmatprep.subr.mxu0 0.0
    %394 = vmatpush1.msra.mxu0 %v329
    %395 = vmatprep.subr.mxu0 0.0
    %396 = vmatpush1.msra.mxu0 %v330
    %397 = vmatprep.subr.mxu0 0.0
    %398 = vmatpush1.msra.mxu0 %v331
    %399 = vmatprep.subr.mxu0 0.0
    %400 = vmatpush1.msra.mxu0 %v332
    %401 = vmatprep.subr.mxu0 0.0
    %402 = vmatpush1.msra.mxu0 %v333
    %403 = vmatprep.subr.mxu0 0.0
    %404 = vmatpush1.msra.mxu0 %v334
    %405 = vmatprep.subr.mxu0 0.0
    %406 = vmatpush1.msra.mxu0 %v335
    %407 = vmatprep.mubr.f32.mxu0 %v303
    %408 = vmatmul.mubr.f32.gmra.mrb[0].mxu0 %v302
    %v409 = vpop.f32.mrb[0].mxu0
    %v410 = vadd.f32 %v341, %v409
    %v411 = vpop.f32.mrb[0].mxu0
    %412 = vdwg.mxu0
    %413 = vst.msk [vmem:[#allocation2] sm:$0xff] %vm42, %v410
    // Predicated region
    $region38: #{tpu_custom_call.1} parent=1 // pred_check
      _
    $region39: #{tpu_custom_call.1} parent=1 // pred_check_branch
      %415 = sbr.rel (0) target = $region41
    $region40: #{tpu_custom_call.1} parent=1 // pred_region
      %s417 = ssub.s32 128, 128
      %418 = vsyncadd [#allocation3], %s417
      %s420 = sshll.u32 [#allocation2], 4
      %s421 = int_to_ptr.vmem [resolvable:$true] %s420
      %423 = dma.vmem_to_hbm [thread:$0]  %s421, 128, %s9, [#allocation3]
    $region41: #{tpu_custom_call.1} parent=1 // pred_fallthru
      _
    // Predicated region
    $region42: #{tpu_custom_call.1} parent=1 // pred_check
      _
    $region43: #{tpu_custom_call.1} parent=1 // pred_check_branch
      %425 = sbr.rel (0) target = $region45
    $region44: #{tpu_custom_call.1} parent=1 // pred_region
      %426 = dma.done [#allocation3], 128
    $region45: #{tpu_custom_call.1} parent=1 // pred_fallthru
      _
    %427 = vsyncpa [#allocation3], 1

</llo_original>
